<compile_context>
chip_gen: v7x
topology: tpu7x:2x2x1
jax: 0.10.0
libtpu: 0.0.40
codegen_flags: <defaults>
</compile_context>

<pallas_src>
import numpy as np
import jax
import jax.numpy as jnp
from jax.experimental import pallas as pl
from jax.experimental.pallas import tpu as pltpu


def mlpgc_kernel(x_ref, w1_ref, b1_ref, w2_ref, b2_ref,
                 w3_ref, b3_ref, w4_ref, b4_ref, out_ref):
    """One batch tile: four MXU matmuls; bias adds + ReLU on the VPU."""
    x = x_ref[...]                                                        # [TB, V*L]
    h = jnp.dot(x, w1_ref[...], preferred_element_type=jnp.float32) + b1_ref[...]
    h = jnp.maximum(h, 0.0)                                               # [TB, V*H1]
    h = jnp.dot(h, w2_ref[...], preferred_element_type=jnp.float32) + b2_ref[...]
    h = jnp.maximum(h, 0.0)                                               # [TB, V*H1]
    z = jnp.dot(h, w3_ref[...], preferred_element_type=jnp.float32) + b3_ref[...]
    z = jnp.maximum(z, 0.0)                                               # [TB, H2]
    pred = jnp.dot(z, w4_ref[...], preferred_element_type=jnp.float32) + b4_ref[...]
    out_ref[...] = pred.astype(out_ref.dtype)                             # [TB, NOUT]


def _round_up(n, m):
    return ((n + m - 1) // m) * m


def _block_diag(blocks):
    """Stacked [V, r, c] per-variable weights -> [V*r, V*c] block-diagonal matrix."""
    v, r, c = blocks.shape
    out = jnp.zeros((v * r, v * c), blocks.dtype)
    for i in range(v):
        out = out.at[i * r:(i + 1) * r, i * c:(i + 1) * c].set(blocks[i])
    return out


def prepare_params(params, *, num_vars):
    """One-time restructuring: block-diagonal sub-network weights + impw folded into W3."""
    h1 = params["w1"].shape[-1]
    w1_bd = _block_diag(params["w1"])                                # [V*L,  V*H1]
    w2_bd = _block_diag(params["w2"])                                # [V*H1, V*H1]
    b1 = params["b1"].reshape(1, num_vars * h1)
    b2 = params["b2"].reshape(1, num_vars * h1)
    scale = jnp.repeat(params["impw"].reshape(num_vars), h1)[:, None]  # [V*H1, 1]
    w3_scaled = params["w3"] * scale                                 # fold impw into W3 rows
    return {"w1": w1_bd, "b1": b1, "w2": w2_bd, "b2": b2,
            "w3": w3_scaled, "b3": params["b3"],
            "w4": params["w4"], "b4": params["b4"]}


def mlpgc_forward(x, prepped, *, block_b=512):
    """Batched forward pass. Streams batch tiles; weights stay VMEM-resident."""
    B, vl = x.shape
    vh1 = prepped["w1"].shape[1]
    h2 = prepped["w3"].shape[1]
    nout = prepped["w4"].shape[1]

    tb = min(block_b, _round_up(B, 8))          # f32 sublane: TB multiple of 8
    b_pad = _round_up(B, tb)                    # pad batch so every tile is full
    if b_pad != B:
        x = jnp.pad(x, ((0, b_pad - B), (0, 0)))

    def resident(shape):
        # Weight / bias blocks: full array, index_map always block 0 -> no re-DMA.
        return pl.BlockSpec(shape, lambda i: (0, 0))

    out = pl.pallas_call(
        mlpgc_kernel,
        out_shape=jax.ShapeDtypeStruct((b_pad, nout), jnp.float32),
        grid=(b_pad // tb,),
        in_specs=[
            pl.BlockSpec((tb, vl), lambda i: (i, 0)),   # x: streamed batch tiles
            resident((vl, vh1)),                        # W1 block-diagonal
            resident((1, vh1)),                         # b1 (concatenated)
            resident((vh1, vh1)),                       # W2 block-diagonal
            resident((1, vh1)),                         # b2 (concatenated)
            resident((vh1, h2)),                        # W3 (impw-folded)
            resident((1, h2)),                          # b3
            resident((h2, nout)),                       # W4
            resident((1, nout)),                        # b4
        ],
        out_specs=pl.BlockSpec((tb, nout), lambda i: (i, 0)),
        compiler_params=pltpu.CompilerParams(dimension_semantics=("parallel",)),
    )(x, prepped["w1"], prepped["b1"], prepped["w2"], prepped["b2"],
      prepped["w3"], prepped["b3"], prepped["w4"], prepped["b4"])
    return out[:B]


# ------------------------- init + pure-JAX reference -------------------------

def xavier_normal(key, shape):
    fan_in, fan_out = shape[-2], shape[-1]
    std = np.sqrt(2.0 / (fan_in + fan_out))
    return (std * jax.random.normal(key, shape, dtype=jnp.float32)).astype(jnp.float32)


def init_params(key, num_vars, lag, h1, h2, num_outputs):
    k = jax.random.split(key, 6)
    params = {
        "w1": xavier_normal(k[0], (num_vars, lag, h1)),
        "b1": jnp.full((num_vars, 1, h1), 0.1, dtype=jnp.float32),
        "w2": xavier_normal(k[1], (num_vars, h1, h1)),
        "b2": jnp.full((num_vars, 1, h1), 0.1, dtype=jnp.float32),
        "impw": (jnp.full((num_vars,), 1.0 / num_vars, dtype=jnp.float32)
                 + 1e-5 * jax.random.normal(k[2], (num_vars,), dtype=jnp.float32)),
        "w3": xavier_normal(k[3], (num_vars * h1, h2)),
        "b3": jnp.full((1, h2), 0.1, dtype=jnp.float32),
        "w4": xavier_normal(k[4], (h2, num_outputs)),
        "b4": jnp.full((1, num_outputs), 0.1, dtype=jnp.float32),
    }
    return params, k[5]


def reference_forward(x, params, *, num_vars, lag):
    parts = []
    for i in range(num_vars):
        xi = x[:, i * lag:(i + 1) * lag]
        h = jnp.maximum(xi @ params["w1"][i] + params["b1"][i], 0.0)
        h = jnp.maximum(h @ params["w2"][i] + params["b2"][i], 0.0)
        parts.append(params["impw"][i] * h)
    agg = jnp.concatenate(parts, axis=1)
    z = jnp.maximum(agg @ params["w3"] + params["b3"], 0.0)
    return z @ params["w4"] + params["b4"]


if __name__ == "__main__":
    NUM_VARS, LAG = 4, 8
    HIDDEN_1, HIDDEN_2 = 16, 32
    NUM_OUTPUTS = 1
    BATCH = 2

    params, key = init_params(jax.random.PRNGKey(0), NUM_VARS, LAG,
                              HIDDEN_1, HIDDEN_2, NUM_OUTPUTS)
    prepped = prepare_params(params, num_vars=NUM_VARS)

    # Small canonical check (batch = 2).
    x = jax.random.normal(key, (BATCH, NUM_VARS * LAG), dtype=jnp.float32)
    out = jax.block_until_ready(mlpgc_forward(x, prepped))
    ref = reference_forward(x, params, num_vars=NUM_VARS, lag=LAG)
    np.testing.assert_allclose(np.asarray(out), np.asarray(ref), rtol=1e-5, atol=1e-5)

    # Exercise the multi-tile batch grid + tail padding path (B % TB != 0).
    kb, _ = jax.random.split(key)
    xb = jax.random.normal(kb, (520, NUM_VARS * LAG), dtype=jnp.float32)
    outb = jax.block_until_ready(mlpgc_forward(xb, prepped, block_b=256))
    refb = reference_forward(xb, params, num_vars=NUM_VARS, lag=LAG)
    np.testing.assert_allclose(np.asarray(outb), np.asarray(refb), rtol=1e-5, atol=1e-5)

    print("KERNEL_OK")
</pallas_src>

<mosaic_0001>
module attributes {stable_mosaic.version = 11 : i64} {
  func.func @mlpgc_kernel(%arg0: i32, %arg1: memref<8x32xf32, #tpu.memory_space<vmem>>, %arg2: memref<32x64xf32, #tpu.memory_space<vmem>>, %arg3: memref<1x64xf32, #tpu.memory_space<vmem>>, %arg4: memref<64x64xf32, #tpu.memory_space<vmem>>, %arg5: memref<1x64xf32, #tpu.memory_space<vmem>>, %arg6: memref<64x32xf32, #tpu.memory_space<vmem>>, %arg7: memref<1x32xf32, #tpu.memory_space<vmem>>, %arg8: memref<32x1xf32, #tpu.memory_space<vmem>>, %arg9: memref<1x1xf32, #tpu.memory_space<vmem>>, %arg10: memref<8x1xf32, #tpu.memory_space<vmem>>) attributes {dimension_semantics = [#tpu.dimension_semantics<parallel>], iteration_bounds = array<i64: 1>, scalar_prefetch = 0 : i64, scratch_operands = 0 : i64, tpu.core_type = #tpu.core_type<tc>, window_params = [{transform_indices = @transform_0, window_bounds = array<i64: 8, 32>}, {pipeline_mode = #tpu.pipeline_mode<synchronous>, transform_indices = @transform_1, window_bounds = array<i64: 32, 64>}, {pipeline_mode = #tpu.pipeline_mode<synchronous>, transform_indices = @transform_2, window_bounds = array<i64: 1, 64>}, {pipeline_mode = #tpu.pipeline_mode<synchronous>, transform_indices = @transform_3, window_bounds = array<i64: 64, 64>}, {pipeline_mode = #tpu.pipeline_mode<synchronous>, transform_indices = @transform_4, window_bounds = array<i64: 1, 64>}, {pipeline_mode = #tpu.pipeline_mode<synchronous>, transform_indices = @transform_5, window_bounds = array<i64: 64, 32>}, {pipeline_mode = #tpu.pipeline_mode<synchronous>, transform_indices = @transform_6, window_bounds = array<i64: 1, 32>}, {pipeline_mode = #tpu.pipeline_mode<synchronous>, transform_indices = @transform_7, window_bounds = array<i64: 32, 1>}, {pipeline_mode = #tpu.pipeline_mode<synchronous>, transform_indices = @transform_8, window_bounds = array<i64: 1, 1>}, {transform_indices = @transform_9, window_bounds = array<i64: 8, 1>}]} {
    %c0 = arith.constant 0 : index
    %c0_0 = arith.constant 0 : index
    %0 = vector.load %arg1[%c0, %c0_0] : memref<8x32xf32, #tpu.memory_space<vmem>>, vector<8x32xf32>
    %c0_1 = arith.constant 0 : index
    %c0_2 = arith.constant 0 : index
    %1 = vector.load %arg2[%c0_1, %c0_2] : memref<32x64xf32, #tpu.memory_space<vmem>>, vector<32x64xf32>
    %cst = arith.constant dense<0.000000e+00> : vector<8x64xf32>
    %2 = tpu.matmul %0, %1, %cst {dimension_numbers = #tpu.dot_dimension_numbers<[1], [0], [0], [1], [0, 0, 1, 1], [], []>} : vector<8x32xf32>, vector<32x64xf32>, vector<8x64xf32> -> vector<8x64xf32>
    %c0_3 = arith.constant 0 : index
    %c0_4 = arith.constant 0 : index
    %3 = vector.load %arg3[%c0_3, %c0_4] : memref<1x64xf32, #tpu.memory_space<vmem>>, vector<1x64xf32>
    %4 = vector.broadcast %3 : vector<1x64xf32> to vector<8x64xf32>
    %5 = arith.addf %2, %4 : vector<8x64xf32>
    %cst_5 = arith.constant 0.000000e+00 : f32
    %6 = vector.broadcast %cst_5 : f32 to vector<8x64xf32>
    %7 = arith.maximumf %5, %6 : vector<8x64xf32>
    %c0_6 = arith.constant 0 : index
    %c0_7 = arith.constant 0 : index
    %8 = vector.load %arg4[%c0_6, %c0_7] : memref<64x64xf32, #tpu.memory_space<vmem>>, vector<64x64xf32>
    %cst_8 = arith.constant dense<0.000000e+00> : vector<8x64xf32>
    %9 = tpu.matmul %7, %8, %cst_8 {dimension_numbers = #tpu.dot_dimension_numbers<[1], [0], [0], [1], [0, 0, 1, 1], [], []>} : vector<8x64xf32>, vector<64x64xf32>, vector<8x64xf32> -> vector<8x64xf32>
    %c0_9 = arith.constant 0 : index
    %c0_10 = arith.constant 0 : index
    %10 = vector.load %arg5[%c0_9, %c0_10] : memref<1x64xf32, #tpu.memory_space<vmem>>, vector<1x64xf32>
    %11 = vector.broadcast %10 : vector<1x64xf32> to vector<8x64xf32>
    %12 = arith.addf %9, %11 : vector<8x64xf32>
    %cst_11 = arith.constant 0.000000e+00 : f32
    %13 = vector.broadcast %cst_11 : f32 to vector<8x64xf32>
    %14 = arith.maximumf %12, %13 : vector<8x64xf32>
    %c0_12 = arith.constant 0 : index
    %c0_13 = arith.constant 0 : index
    %15 = vector.load %arg6[%c0_12, %c0_13] : memref<64x32xf32, #tpu.memory_space<vmem>>, vector<64x32xf32>
    %cst_14 = arith.constant dense<0.000000e+00> : vector<8x32xf32>
    %16 = tpu.matmul %14, %15, %cst_14 {dimension_numbers = #tpu.dot_dimension_numbers<[1], [0], [0], [1], [0, 0, 1, 1], [], []>} : vector<8x64xf32>, vector<64x32xf32>, vector<8x32xf32> -> vector<8x32xf32>
    %c0_15 = arith.constant 0 : index
    %c0_16 = arith.constant 0 : index
    %17 = vector.load %arg7[%c0_15, %c0_16] : memref<1x32xf32, #tpu.memory_space<vmem>>, vector<1x32xf32>
    %18 = vector.broadcast %17 : vector<1x32xf32> to vector<8x32xf32>
    %19 = arith.addf %16, %18 : vector<8x32xf32>
    %cst_17 = arith.constant 0.000000e+00 : f32
    %20 = vector.broadcast %cst_17 : f32 to vector<8x32xf32>
    %21 = arith.maximumf %19, %20 : vector<8x32xf32>
    %c0_18 = arith.constant 0 : index
    %c0_19 = arith.constant 0 : index
    %22 = vector.load %arg8[%c0_18, %c0_19] : memref<32x1xf32, #tpu.memory_space<vmem>>, vector<32x1xf32>
    %cst_20 = arith.constant dense<0.000000e+00> : vector<8x1xf32>
    %23 = tpu.matmul %21, %22, %cst_20 {dimension_numbers = #tpu.dot_dimension_numbers<[1], [0], [0], [1], [0, 0, 1, 1], [], []>} : vector<8x32xf32>, vector<32x1xf32>, vector<8x1xf32> -> vector<8x1xf32>
    %c0_21 = arith.constant 0 : index
    %c0_22 = arith.constant 0 : index
    %24 = vector.load %arg9[%c0_21, %c0_22] : memref<1x1xf32, #tpu.memory_space<vmem>>, vector<1x1xf32>
    %25 = vector.broadcast %24 : vector<1x1xf32> to vector<8x1xf32>
    %26 = arith.addf %23, %25 : vector<8x1xf32>
    %c0_23 = arith.constant 0 : index
    %c0_24 = arith.constant 0 : index
    %27 = vector.load %arg10[%c0_23, %c0_24] : memref<8x1xf32, #tpu.memory_space<vmem>>, vector<8x1xf32>
    tpu.vector_store %arg10[%c0_23, %c0_24], %26 {strides = array<i32>} : memref<8x1xf32, #tpu.memory_space<vmem>>, vector<8x1xf32>,
    return
  }
  func.func @transform_0(%arg0: i32) -> (i32, i32) {
    %c0_i32 = arith.constant 0 : i32
    %c0_i32_0 = arith.constant 0 : i32
    return %arg0, %c0_i32 : i32, i32
  }
  func.func @transform_1(%arg0: i32) -> (i32, i32) {
    %c0_i32 = arith.constant 0 : i32
    %c0_i32_0 = arith.constant 0 : i32
    %c0_i32_1 = arith.constant 0 : i32
    return %c0_i32, %c0_i32_0 : i32, i32
  }
  func.func @transform_2(%arg0: i32) -> (i32, i32) {
    %c0_i32 = arith.constant 0 : i32
    %c0_i32_0 = arith.constant 0 : i32
    %c0_i32_1 = arith.constant 0 : i32
    return %c0_i32, %c0_i32_0 : i32, i32
  }
  func.func @transform_3(%arg0: i32) -> (i32, i32) {
    %c0_i32 = arith.constant 0 : i32
    %c0_i32_0 = arith.constant 0 : i32
    %c0_i32_1 = arith.constant 0 : i32
    return %c0_i32, %c0_i32_0 : i32, i32
  }
  func.func @transform_4(%arg0: i32) -> (i32, i32) {
    %c0_i32 = arith.constant 0 : i32
    %c0_i32_0 = arith.constant 0 : i32
    %c0_i32_1 = arith.constant 0 : i32
    return %c0_i32, %c0_i32_0 : i32, i32
  }
  func.func @transform_5(%arg0: i32) -> (i32, i32) {
    %c0_i32 = arith.constant 0 : i32
    %c0_i32_0 = arith.constant 0 : i32
    %c0_i32_1 = arith.constant 0 : i32
    return %c0_i32, %c0_i32_0 : i32, i32
  }
  func.func @transform_6(%arg0: i32) -> (i32, i32) {
    %c0_i32 = arith.constant 0 : i32
    %c0_i32_0 = arith.constant 0 : i32
    %c0_i32_1 = arith.constant 0 : i32
    return %c0_i32, %c0_i32_0 : i32, i32
  }
  func.func @transform_7(%arg0: i32) -> (i32, i32) {
    %c0_i32 = arith.constant 0 : i32
    %c0_i32_0 = arith.constant 0 : i32
    %c0_i32_1 = arith.constant 0 : i32
    return %c0_i32, %c0_i32_0 : i32, i32
  }
  func.func @transform_8(%arg0: i32) -> (i32, i32) {
    %c0_i32 = arith.constant 0 : i32
    %c0_i32_0 = arith.constant 0 : i32
    %c0_i32_1 = arith.constant 0 : i32
    return %c0_i32, %c0_i32_0 : i32, i32
  }
  func.func @transform_9(%arg0: i32) -> (i32, i32) {
    %c0_i32 = arith.constant 0 : i32
    %c0_i32_0 = arith.constant 0 : i32
    return %arg0, %c0_i32 : i32, i32
  }
}

</mosaic_0001>

<llo_original>
// kernel: tpu_custom_call.1
$region0: #{tpu_custom_call.1}
  #allocation0 [shape = 'u32[]', space=smem, size = 0x4, offset = 0x4, fixed_abs, tag = 'smem constant byte address 0x4 - core index']
  #allocation1 [shape = 'u32[144,128]{1,0:T(1,128)}', space=vmem, size = 0x12000, scoped, tag = 'internal scratch']
  #allocation2 [shape = 'f32[1,1]{1,0:T(1,128)S(1)}', space=vmem, size = 0x200, scoped, tag = 'scoped memory for tpu_custom_call.1']
  %s0 = inlined_call_operand.vmem [shape: f32[8,32], index: 0, kind: input, shape index: {}]
  %s1 = inlined_call_operand.vmem [shape: f32[32,64], index: 1, kind: input, shape index: {}]
  %s2 = inlined_call_operand.vmem [shape: f32[1,64], index: 2, kind: input, shape index: {}]
  %s3 = inlined_call_operand.vmem [shape: f32[64,64], index: 3, kind: input, shape index: {}]
  %s4 = inlined_call_operand.vmem [shape: f32[1,64], index: 4, kind: input, shape index: {}]
  %s5 = inlined_call_operand.vmem [shape: f32[64,32], index: 5, kind: input, shape index: {}]
  %s6 = inlined_call_operand.vmem [shape: f32[1,32], index: 6, kind: input, shape index: {}]
  %s7 = inlined_call_operand.vmem [shape: f32[32,1], index: 7, kind: input, shape index: {}]
  %s8 = inlined_call_operand.<no memory space> [shape: f32[1,1], index: 8, kind: input, shape index: {}]
  %s9 = inlined_call_operand.vmem [shape: f32[8,1], index: 9, kind: output, shape index: {}]
  %s10 = sld [smem:[#allocation0]]
  $region46: #{tpu_custom_call.1} parent=0
    _
  %s12 = ssub.s32 1, %s10
  %s13 = scalar_select 0, %s12, %s10
  %v14 = vstv %s8
  %15 = vst [vmem:[#allocation2] sm:$0x1] %v14
  // Predicated region
  $region2: #{tpu_custom_call.1} parent=0 // pred_check
    _
  $region3: #{tpu_custom_call.1} parent=0 // pred_check_branch
    %17 = sbr.rel (0) target = $region5
  $region4: #{tpu_custom_call.1} parent=0 // pred_region
    _
  $region5: #{tpu_custom_call.1} parent=0 // pred_fallthru
    _
  // Predicated region
  $region6: #{tpu_custom_call.1} parent=0 // pred_check
    _
  $region7: #{tpu_custom_call.1} parent=0 // pred_check_branch
    %19 = sbr.rel (0) target = $region9
  $region8: #{tpu_custom_call.1} parent=0 // pred_region
    _
  $region9: #{tpu_custom_call.1} parent=0 // pred_fallthru
    _
  // Predicated region
  $region10: #{tpu_custom_call.1} parent=0 // pred_check
    _
  $region11: #{tpu_custom_call.1} parent=0 // pred_check_branch
    %21 = sbr.rel (0) target = $region13
  $region12: #{tpu_custom_call.1} parent=0 // pred_region
    _
  $region13: #{tpu_custom_call.1} parent=0 // pred_fallthru
    _
  // Predicated region
  $region14: #{tpu_custom_call.1} parent=0 // pred_check
    _
  $region15: #{tpu_custom_call.1} parent=0 // pred_check_branch
    %23 = sbr.rel (0) target = $region17
  $region16: #{tpu_custom_call.1} parent=0 // pred_region
    _
  $region17: #{tpu_custom_call.1} parent=0 // pred_fallthru
    _
  // Predicated region
  $region18: #{tpu_custom_call.1} parent=0 // pred_check
    _
  $region19: #{tpu_custom_call.1} parent=0 // pred_check_branch
    %25 = sbr.rel (0) target = $region21
  $region20: #{tpu_custom_call.1} parent=0 // pred_region
    _
  $region21: #{tpu_custom_call.1} parent=0 // pred_fallthru
    _
  // Predicated region
  $region22: #{tpu_custom_call.1} parent=0 // pred_check
    _
  $region23: #{tpu_custom_call.1} parent=0 // pred_check_branch
    %27 = sbr.rel (0) target = $region25
  $region24: #{tpu_custom_call.1} parent=0 // pred_region
    _
  $region25: #{tpu_custom_call.1} parent=0 // pred_fallthru
    _
  // Predicated region
  $region26: #{tpu_custom_call.1} parent=0 // pred_check
    _
  $region27: #{tpu_custom_call.1} parent=0 // pred_check_branch
    %29 = sbr.rel (0) target = $region29
  $region28: #{tpu_custom_call.1} parent=0 // pred_region
    _
  $region29: #{tpu_custom_call.1} parent=0 // pred_fallthru
    _
  // Predicated region
  $region30: #{tpu_custom_call.1} parent=0 // pred_check
    _
  $region31: #{tpu_custom_call.1} parent=0 // pred_check_branch
    %31 = sbr.rel (0) target = $region33
  $region32: #{tpu_custom_call.1} parent=0 // pred_region
    _
  $region33: #{tpu_custom_call.1} parent=0 // pred_fallthru
    _
  // Predicated region
  $region34: #{tpu_custom_call.1} parent=0 // pred_check
    _
  $region35: #{tpu_custom_call.1} parent=0 // pred_check_branch
    %33 = sbr.rel (0) target = $region37
  $region36: #{tpu_custom_call.1} parent=0 // pred_region
    _
  $region37: #{tpu_custom_call.1} parent=0 // pred_fallthru
    _
  %v34 = vld [vmem:[%s0] sm:$0xff]
  %v35 = vld [vmem:[%s1] sm:$0xff]
  %v36 = vld [vmem:[%s1 + $0x8] sm:$0xff]
  %v37 = vld [vmem:[%s1 + $0x10] sm:$0xff]
  %v38 = vld [vmem:[%s1 + $0x18] sm:$0xff]
  %v39 = vld [vmem:[%s2] sm:$0x1]
  %v41 = vlaneseq
  %v42 = vshrl.u32 %v41, 7
  %v43 = vsub.s32 0, %v42
  %v44 = vrot.slane %v39, %v43
  %vm46 = vcmask 261120
  %v48 = vsel %vm46, %v34, 0
  %50 = vmatprep.subr.mxu0 0.0
  %51 = vmatpush1.msra.mxu0 %v35
  %52 = vmatprep.subr.mxu0 0.0
  %53 = vmatpush1.msra.mxu0 %v36
  %54 = vmatprep.subr.mxu0 0.0
  %55 = vmatpush1.msra.mxu0 %v37
  %56 = vmatprep.subr.mxu0 0.0
  %57 = vmatpush1.msra.mxu0 %v38
  %58 = vmatprep.subr.mxu0 0.0
  %59 = vmatpush1.msra.mxu0 0.0
  %60 = vmatprep.subr.mxu0 0.0
  %61 = vmatpush1.msra.mxu0 0.0
  %62 = vmatprep.subr.mxu0 0.0
  %63 = vmatpush1.msra.mxu0 0.0
  %64 = vmatprep.subr.mxu0 0.0
  %65 = vmatpush1.msra.mxu0 0.0
  %66 = vmatprep.subr.mxu0 0.0
  %67 = vmatpush1.msra.mxu0 0.0
  %68 = vmatprep.subr.mxu0 0.0
  %69 = vmatpush1.msra.mxu0 0.0
  %70 = vmatprep.subr.mxu0 0.0
  %71 = vmatpush1.msra.mxu0 0.0
  %72 = vmatprep.subr.mxu0 0.0
  %73 = vmatpush1.msra.mxu0 0.0
  %74 = vmatprep.subr.mxu0 0.0
  %75 = vmatpush1.msra.mxu0 0.0
  %76 = vmatprep.subr.mxu0 0.0
  %77 = vmatpush1.msra.mxu0 0.0
  %78 = vmatprep.subr.mxu0 0.0
  %79 = vmatpush1.msra.mxu0 0.0
  %80 = vmatprep.subr.mxu0 0.0
  %81 = vmatpush1.msra.mxu0 0.0
  %82 = vmatprep.subr.mxu0 0.0
  %83 = vmatpush1.msra.mxu0 0.0
  %84 = vmatprep.subr.mxu0 0.0
  %85 = vmatpush1.msra.mxu0 0.0
  %86 = vmatprep.subr.mxu0 0.0
  %87 = vmatpush1.msra.mxu0 0.0
  %88 = vmatprep.subr.mxu0 0.0
  %89 = vmatpush1.msra.mxu0 0.0
  %90 = vmatprep.subr.mxu0 0.0
  %91 = vmatpush1.msra.mxu0 0.0
  %92 = vmatprep.subr.mxu0 0.0
  %93 = vmatpush1.msra.mxu0 0.0
  %94 = vmatprep.subr.mxu0 0.0
  %95 = vmatpush1.msra.mxu0 0.0
  %96 = vmatprep.subr.mxu0 0.0
  %97 = vmatpush1.msra.mxu0 0.0
  %98 = vmatprep.subr.mxu0 0.0
  %99 = vmatpush1.msra.mxu0 0.0
  %100 = vmatprep.subr.mxu0 0.0
  %101 = vmatpush1.msra.mxu0 0.0
  %102 = vmatprep.subr.mxu0 0.0
  %103 = vmatpush1.msra.mxu0 0.0
  %104 = vmatprep.subr.mxu0 0.0
  %105 = vmatpush1.msra.mxu0 0.0
  %106 = vmatprep.subr.mxu0 0.0
  %107 = vmatpush1.msra.mxu0 0.0
  %108 = vmatprep.subr.mxu0 0.0
  %109 = vmatpush1.msra.mxu0 0.0
  %110 = vmatprep.subr.mxu0 0.0
  %111 = vmatpush1.msra.mxu0 0.0
  %112 = vmatprep.subr.mxu0 0.0
  %113 = vmatpush1.msra.mxu0 0.0
  %114 = vmatprep.mubr.f32.mxu0 0.0
  %115 = vmatmul.mubr.f32.gmra.mrb[0].mxu0 %v48
  %v116 = vpop.f32.mrb[0].mxu0
  %v117 = vadd.f32 %v44, %v116
  %v118 = vpop.f32.mrb[0].mxu0
  %119 = vdwg.mxu0
  %v120 = vmax.f32 %v117, 0.0
  %v121 = vld [vmem:[%s3] sm:$0xff]
  %v122 = vld [vmem:[%s3 + $0x8] sm:$0xff]
  %v123 = vld [vmem:[%s3 + $0x10] sm:$0xff]
  %v124 = vld [vmem:[%s3 + $0x18] sm:$0xff]
  %v125 = vld [vmem:[%s3 + $0x20] sm:$0xff]
  %v126 = vld [vmem:[%s3 + $0x28] sm:$0xff]
  %v127 = vld [vmem:[%s3 + $0x30] sm:$0xff]
  %v128 = vld [vmem:[%s3 + $0x38] sm:$0xff]
  %v129 = vld [vmem:[%s4] sm:$0x1]
  %v131 = vlaneseq
  %v132 = vshrl.u32 %v131, 7
  %v133 = vsub.s32 0, %v132
  %v134 = vrot.slane %v129, %v133
  %vm136 = vcmask 523264
  %v138 = vsel %vm136, %v120, 0
  %140 = vmatprep.subr.mxu0 0.0
  %141 = vmatpush1.msra.mxu0 %v121
  %142 = vmatprep.subr.mxu0 0.0
  %143 = vmatpush1.msra.mxu0 %v122
  %144 = vmatprep.subr.mxu0 0.0
  %145 = vmatpush1.msra.mxu0 %v123
  %146 = vmatprep.subr.mxu0 0.0
  %147 = vmatpush1.msra.mxu0 %v124
  %148 = vmatprep.subr.mxu0 0.0
  %149 = vmatpush1.msra.mxu0 %v125
  %150 = vmatprep.subr.mxu0 0.0
  %151 = vmatpush1.msra.mxu0 %v126
  %152 = vmatprep.subr.mxu0 0.0
  %153 = vmatpush1.msra.mxu0 %v127
  %154 = vmatprep.subr.mxu0 0.0
  %155 = vmatpush1.msra.mxu0 %v128
  %156 = vmatprep.subr.mxu0 0.0
  %157 = vmatpush1.msra.mxu0 0.0
  %158 = vmatprep.subr.mxu0 0.0
  %159 = vmatpush1.msra.mxu0 0.0
  %160 = vmatprep.subr.mxu0 0.0
  %161 = vmatpush1.msra.mxu0 0.0
  %162 = vmatprep.subr.mxu0 0.0
  %163 = vmatpush1.msra.mxu0 0.0
  %164 = vmatprep.subr.mxu0 0.0
  %165 = vmatpush1.msra.mxu0 0.0
  %166 = vmatprep.subr.mxu0 0.0
  %167 = vmatpush1.msra.mxu0 0.0
  %168 = vmatprep.subr.mxu0 0.0
  %169 = vmatpush1.msra.mxu0 0.0
  %170 = vmatprep.subr.mxu0 0.0
  %171 = vmatpush1.msra.mxu0 0.0
  %172 = vmatprep.subr.mxu0 0.0
  %173 = vmatpush1.msra.mxu0 0.0
  %174 = vmatprep.subr.mxu0 0.0
  %175 = vmatpush1.msra.mxu0 0.0
  %176 = vmatprep.subr.mxu0 0.0
  %177 = vmatpush1.msra.mxu0 0.0
  %178 = vmatprep.subr.mxu0 0.0
  %179 = vmatpush1.msra.mxu0 0.0
  %180 = vmatprep.subr.mxu0 0.0
  %181 = vmatpush1.msra.mxu0 0.0
  %182 = vmatprep.subr.mxu0 0.0
  %183 = vmatpush1.msra.mxu0 0.0
  %184 = vmatprep.subr.mxu0 0.0
  %185 = vmatpush1.msra.mxu0 0.0
  %186 = vmatprep.subr.mxu0 0.0
  %187 = vmatpush1.msra.mxu0 0.0
  %188 = vmatprep.subr.mxu0 0.0
  %189 = vmatpush1.msra.mxu0 0.0
  %190 = vmatprep.subr.mxu0 0.0
  %191 = vmatpush1.msra.mxu0 0.0
  %192 = vmatprep.subr.mxu0 0.0
  %193 = vmatpush1.msra.mxu0 0.0
  %194 = vmatprep.subr.mxu0 0.0
  %195 = vmatpush1.msra.mxu0 0.0
  %196 = vmatprep.subr.mxu0 0.0
  %197 = vmatpush1.msra.mxu0 0.0
  %198 = vmatprep.subr.mxu0 0.0
  %199 = vmatpush1.msra.mxu0 0.0
  %200 = vmatprep.subr.mxu0 0.0
  %201 = vmatpush1.msra.mxu0 0.0
  %202 = vmatprep.subr.mxu0 0.0
  %203 = vmatpush1.msra.mxu0 0.0
  %204 = vmatprep.mubr.f32.mxu0 0.0
  %205 = vmatmul.mubr.f32.gmra.mrb[0].mxu0 %v138
  %v206 = vpop.f32.mrb[0].mxu0
  %v207 = vadd.f32 %v134, %v206
  %v208 = vpop.f32.mrb[0].mxu0
  %209 = vdwg.mxu0
  %v210 = vmax.f32 %v207, 0.0
  %v211 = vld [vmem:[%s5] sm:$0xff]
  %v212 = vld [vmem:[%s5 + $0x8] sm:$0xff]
  %v213 = vld [vmem:[%s5 + $0x10] sm:$0xff]
  %v214 = vld [vmem:[%s5 + $0x18] sm:$0xff]
  %v215 = vld [vmem:[%s5 + $0x20] sm:$0xff]
  %v216 = vld [vmem:[%s5 + $0x28] sm:$0xff]
  %v217 = vld [vmem:[%s5 + $0x30] sm:$0xff]
  %v218 = vld [vmem:[%s5 + $0x38] sm:$0xff]
  %v219 = vld [vmem:[%s6] sm:$0x1]
  %v221 = vlaneseq
  %v222 = vshrl.u32 %v221, 7
  %v223 = vsub.s32 0, %v222
  %v224 = vrot.slane %v219, %v223
  %v227 = vsel %vm136, %v210, 0
  %229 = vmatprep.subr.mxu0 0.0
  %230 = vmatpush1.msra.mxu0 %v211
  %231 = vmatprep.subr.mxu0 0.0
  %232 = vmatpush1.msra.mxu0 %v212
  %233 = vmatprep.subr.mxu0 0.0
  %234 = vmatpush1.msra.mxu0 %v213
  %235 = vmatprep.subr.mxu0 0.0
  %236 = vmatpush1.msra.mxu0 %v214
  %237 = vmatprep.subr.mxu0 0.0
  %238 = vmatpush1.msra.mxu0 %v215
  %239 = vmatprep.subr.mxu0 0.0
  %240 = vmatpush1.msra.mxu0 %v216
  %241 = vmatprep.subr.mxu0 0.0
  %242 = vmatpush1.msra.mxu0 %v217
  %243 = vmatprep.subr.mxu0 0.0
  %244 = vmatpush1.msra.mxu0 %v218
  %245 = vmatprep.subr.mxu0 0.0
  %246 = vmatpush1.msra.mxu0 0.0
  %247 = vmatprep.subr.mxu0 0.0
  %248 = vmatpush1.msra.mxu0 0.0
  %249 = vmatprep.subr.mxu0 0.0
  %250 = vmatpush1.msra.mxu0 0.0
  %251 = vmatprep.subr.mxu0 0.0
  %252 = vmatpush1.msra.mxu0 0.0
  %253 = vmatprep.subr.mxu0 0.0
  %254 = vmatpush1.msra.mxu0 0.0
  %255 = vmatprep.subr.mxu0 0.0
  %256 = vmatpush1.msra.mxu0 0.0
  %257 = vmatprep.subr.mxu0 0.0
  %258 = vmatpush1.msra.mxu0 0.0
  %259 = vmatprep.subr.mxu0 0.0
  %260 = vmatpush1.msra.mxu0 0.0
  %261 = vmatprep.subr.mxu0 0.0
  %262 = vmatpush1.msra.mxu0 0.0
  %263 = vmatprep.subr.mxu0 0.0
  %264 = vmatpush1.msra.mxu0 0.0
  %265 = vmatprep.subr.mxu0 0.0
  %266 = vmatpush1.msra.mxu0 0.0
  %267 = vmatprep.subr.mxu0 0.0
  %268 = vmatpush1.msra.mxu0 0.0
  %269 = vmatprep.subr.mxu0 0.0
  %270 = vmatpush1.msra.mxu0 0.0
  %271 = vmatprep.subr.mxu0 0.0
  %272 = vmatpush1.msra.mxu0 0.0
  %273 = vmatprep.subr.mxu0 0.0
  %274 = vmatpush1.msra.mxu0 0.0
  %275 = vmatprep.subr.mxu0 0.0
  %276 = vmatpush1.msra.mxu0 0.0
  %277 = vmatprep.subr.mxu0 0.0
  %278 = vmatpush1.msra.mxu0 0.0
  %279 = vmatprep.subr.mxu0 0.0
  %280 = vmatpush1.msra.mxu0 0.0
  %281 = vmatprep.subr.mxu0 0.0
  %282 = vmatpush1.msra.mxu0 0.0
  %283 = vmatprep.subr.mxu0 0.0
  %284 = vmatpush1.msra.mxu0 0.0
  %285 = vmatprep.subr.mxu0 0.0
  %286 = vmatpush1.msra.mxu0 0.0
  %287 = vmatprep.subr.mxu0 0.0
  %288 = vmatpush1.msra.mxu0 0.0
  %289 = vmatprep.subr.mxu0 0.0
  %290 = vmatpush1.msra.mxu0 0.0
  %291 = vmatprep.subr.mxu0 0.0
  %292 = vmatpush1.msra.mxu0 0.0
  %293 = vmatprep.mubr.f32.mxu0 0.0
  %294 = vmatmul.mubr.f32.gmra.mrb[0].mxu0 %v227
  %v295 = vpop.f32.mrb[0].mxu0
  %v296 = vadd.f32 %v224, %v295
  %v297 = vpop.f32.mrb[0].mxu0
  %298 = vdwg.mxu0
  %v299 = vmax.f32 %v296, 0.0
  %v300 = vld [vmem:[%s7] sm:$0xff]
  %v301 = vld [vmem:[%s7 + $0x8] sm:$0xff]
  %v302 = vld [vmem:[%s7 + $0x10] sm:$0xff]
  %v303 = vld [vmem:[%s7 + $0x18] sm:$0xff]
  %v304 = vld [vmem:[#allocation2] sm:$0x1]
  %v306 = vlaneseq
  %v307 = vshrl.u32 %v306, 7
  %v308 = vsub.s32 0, %v307
  %v309 = vrot.slane %v304, %v308
  %v312 = vsel %vm46, %v299, 0
  %314 = vmatprep.subr.mxu0 0.0
  %315 = vmatpush1.msra.mxu0 %v300
  %316 = vmatprep.subr.mxu0 0.0
  %317 = vmatpush1.msra.mxu0 %v301
  %318 = vmatprep.subr.mxu0 0.0
  %319 = vmatpush1.msra.mxu0 %v302
  %320 = vmatprep.subr.mxu0 0.0
  %321 = vmatpush1.msra.mxu0 %v303
  %322 = vmatprep.subr.mxu0 0.0
  %323 = vmatpush1.msra.mxu0 0.0
  %324 = vmatprep.subr.mxu0 0.0
  %325 = vmatpush1.msra.mxu0 0.0
  %326 = vmatprep.subr.mxu0 0.0
  %327 = vmatpush1.msra.mxu0 0.0
  %328 = vmatprep.subr.mxu0 0.0
  %329 = vmatpush1.msra.mxu0 0.0
  %330 = vmatprep.subr.mxu0 0.0
  %331 = vmatpush1.msra.mxu0 0.0
  %332 = vmatprep.subr.mxu0 0.0
  %333 = vmatpush1.msra.mxu0 0.0
  %334 = vmatprep.subr.mxu0 0.0
  %335 = vmatpush1.msra.mxu0 0.0
  %336 = vmatprep.subr.mxu0 0.0
  %337 = vmatpush1.msra.mxu0 0.0
  %338 = vmatprep.subr.mxu0 0.0
  %339 = vmatpush1.msra.mxu0 0.0
  %340 = vmatprep.subr.mxu0 0.0
  %341 = vmatpush1.msra.mxu0 0.0
  %342 = vmatprep.subr.mxu0 0.0
  %343 = vmatpush1.msra.mxu0 0.0
  %344 = vmatprep.subr.mxu0 0.0
  %345 = vmatpush1.msra.mxu0 0.0
  %346 = vmatprep.subr.mxu0 0.0
  %347 = vmatpush1.msra.mxu0 0.0
  %348 = vmatprep.subr.mxu0 0.0
  %349 = vmatpush1.msra.mxu0 0.0
  %350 = vmatprep.subr.mxu0 0.0
  %351 = vmatpush1.msra.mxu0 0.0
  %352 = vmatprep.subr.mxu0 0.0
  %353 = vmatpush1.msra.mxu0 0.0
  %354 = vmatprep.subr.mxu0 0.0
  %355 = vmatpush1.msra.mxu0 0.0
  %356 = vmatprep.subr.mxu0 0.0
  %357 = vmatpush1.msra.mxu0 0.0
  %358 = vmatprep.subr.mxu0 0.0
  %359 = vmatpush1.msra.mxu0 0.0
  %360 = vmatprep.subr.mxu0 0.0
  %361 = vmatpush1.msra.mxu0 0.0
  %362 = vmatprep.subr.mxu0 0.0
  %363 = vmatpush1.msra.mxu0 0.0
  %364 = vmatprep.subr.mxu0 0.0
  %365 = vmatpush1.msra.mxu0 0.0
  %366 = vmatprep.subr.mxu0 0.0
  %367 = vmatpush1.msra.mxu0 0.0
  %368 = vmatprep.subr.mxu0 0.0
  %369 = vmatpush1.msra.mxu0 0.0
  %370 = vmatprep.subr.mxu0 0.0
  %371 = vmatpush1.msra.mxu0 0.0
  %372 = vmatprep.subr.mxu0 0.0
  %373 = vmatpush1.msra.mxu0 0.0
  %374 = vmatprep.subr.mxu0 0.0
  %375 = vmatpush1.msra.mxu0 0.0
  %376 = vmatprep.subr.mxu0 0.0
  %377 = vmatpush1.msra.mxu0 0.0
  %378 = vmatprep.mubr.f32.mxu0 0.0
  %379 = vmatmul.mubr.f32.gmra.mrb[0].mxu0 %v312
  %v380 = vpop.f32.mrb[0].mxu0
  %v381 = vadd.f32 %v309, %v380
  %v382 = vpop.f32.mrb[0].mxu0
  %383 = vdwg.mxu0
  %vm384 = vcmask 7168
  %385 = vst.msk [vmem:[%s9] sm:$0xff] %vm384, %v381
  // Predicated region
  $region38: #{tpu_custom_call.1} parent=0 // pred_check
    _
  $region39: #{tpu_custom_call.1} parent=0 // pred_check_branch
    %387 = sbr.rel (0) target = $region41
  $region40: #{tpu_custom_call.1} parent=0 // pred_region
    _
  $region41: #{tpu_custom_call.1} parent=0 // pred_fallthru
    _
  // Predicated region
  $region42: #{tpu_custom_call.1} parent=0 // pred_check
    _
  $region43: #{tpu_custom_call.1} parent=0 // pred_check_branch
    %389 = sbr.rel (0) target = $region45
  $region44: #{tpu_custom_call.1} parent=0 // pred_region
    _
  $region45: #{tpu_custom_call.1} parent=0 // pred_fallthru
    _

</llo_original>
